<compile_context>
chip_gen: v7x
topology: tpu7x:2x2x1
jax: 0.10.0
libtpu: 0.0.40
codegen_flags: <defaults>
</compile_context>

<pallas_src>
import math
from functools import partial

import jax
import jax.numpy as jnp
from jax.experimental import pallas as pl
from jax.experimental.pallas import tpu as pltpu

_LANES = 128
_SUBLANES = 8
_MAX_BLOCK_ROWS = 2048        # (2048, 128) f32 = 1 MiB tile per input
_NUM_CORES = 2                # parallel leading grid axis (v7x megacore); sequential elsewhere


def _cdiv(a, b):
    return -(-a // b)


def _round_up(x, m):
    return _cdiv(x, m) * m


# ----------------------------- Pallas kernels -------------------------------

def _sq_diff_sum_kernel(x_ref, t_ref, o_ref, acc_ref, *,
                        n_valid, steps_per_core, block_rows):
    """Per-core partial sum of (x - t)^2 with in-kernel tail masking."""
    c = pl.program_id(0)
    i = pl.program_id(1)

    @pl.when(i == 0)
    def _():
        acc_ref[...] = jnp.zeros_like(acc_ref)

    # Logical element offset of this block (uses the un-clamped logical block index).
    base = (c * steps_per_core + i) * (block_rows * _LANES)
    row_ids = jax.lax.broadcasted_iota(jnp.int32, (block_rows, _LANES), 0)
    lane_ids = jax.lax.broadcasted_iota(jnp.int32, (block_rows, _LANES), 1)
    mask = (base + row_ids * _LANES + lane_ids) < n_valid

    d = x_ref[...].astype(jnp.float32) - t_ref[...].astype(jnp.float32)
    acc_ref[...] += jnp.where(mask, d * d, 0.0)

    @pl.when(i == pl.num_programs(1) - 1)
    def _():
        o_ref[...] = jnp.full((1, 1, 1), jnp.sum(acc_ref[...]), jnp.float32)


def _log_sum_kernel(l_ref, o_ref, acc_ref, *,
                    n_valid, steps_per_core, block_rows):
    """Per-core partial sum of log(l) with in-kernel tail masking."""
    c = pl.program_id(0)
    i = pl.program_id(1)

    @pl.when(i == 0)
    def _():
        acc_ref[...] = jnp.zeros_like(acc_ref)

    base = (c * steps_per_core + i) * (block_rows * _LANES)
    row_ids = jax.lax.broadcasted_iota(jnp.int32, (block_rows, _LANES), 0)
    lane_ids = jax.lax.broadcasted_iota(jnp.int32, (block_rows, _LANES), 1)
    mask = (base + row_ids * _LANES + lane_ids) < n_valid

    x_safe = jnp.where(mask, l_ref[...].astype(jnp.float32), 1.0)  # log(1) = 0 for masked lanes
    acc_ref[...] += jnp.log(x_safe)

    @pl.when(i == pl.num_programs(1) - 1)
    def _():
        o_ref[...] = jnp.full((1, 1, 1), jnp.sum(acc_ref[...]), jnp.float32)


# ----------------------------- wrappers --------------------------------------

def _as_tiles(flat):
    """Reshape a flat vector to a lane-dense (rows, 128) array with rows % 8 == 0.

    Only pads (i.e. copies) when the element count is not already a multiple of 8*128;
    image-sized tensors usually are, so the large-tensor path is a free reshape with no
    extra HBM traffic.  Padded / out-of-bounds elements are masked inside the kernel.
    """
    n = flat.shape[0]
    padded = _round_up(max(n, _SUBLANES * _LANES), _SUBLANES * _LANES)
    if padded != n:
        flat = jnp.pad(flat, (0, padded - n))
    return flat.reshape(padded // _LANES, _LANES)


def _reduction_call(kernel_fn, tile_arrays, n_valid, *, flops, transcendentals):
    """Run a 2-axis (parallel cores x arbitrary steps) reduction and return the total."""
    rows = tile_arrays[0].shape[0]
    block_rows = min(_MAX_BLOCK_ROWS, rows)
    n_blocks = _cdiv(rows, block_rows)
    steps_per_core = _cdiv(n_blocks, _NUM_CORES)
    max_block = n_blocks - 1

    def in_idx_map(c, i):
        # Clamp to a valid block so the DMA never goes fully out of bounds; the in-kernel
        # mask (computed from the *logical* index) zeroes any duplicated/overhang block.
        return (jnp.minimum(c * steps_per_core + i, max_block), 0)

    kernel = partial(kernel_fn, n_valid=n_valid,
                     steps_per_core=steps_per_core, block_rows=block_rows)

    bytes_accessed = sum(int(a.size) * a.dtype.itemsize for a in tile_arrays) + _NUM_CORES * 4

    partials = pl.pallas_call(
        kernel,
        out_shape=jax.ShapeDtypeStruct((_NUM_CORES, 1, 1), jnp.float32),
        grid_spec=pltpu.PrefetchScalarGridSpec(
            num_scalar_prefetch=0,
            grid=(_NUM_CORES, steps_per_core),
            in_specs=[pl.BlockSpec((block_rows, _LANES), in_idx_map)
                      for _ in tile_arrays],
            out_specs=pl.BlockSpec((1, 1, 1), lambda c, i: (c, 0, 0)),
            scratch_shapes=[pltpu.VMEM((block_rows, _LANES), jnp.float32)],
        ),
        compiler_params=pltpu.CompilerParams(
            dimension_semantics=("parallel", "arbitrary")),
        cost_estimate=pl.CostEstimate(
            flops=int(flops),
            transcendentals=int(transcendentals),
            bytes_accessed=int(bytes_accessed)),
    )(*tile_arrays)
    return jnp.sum(partials)


def pallas_sq_diff_sum(x, t):
    """sum((x - t)^2) over all elements (native-dtype inputs, f32 accumulation)."""
    n = int(x.size)
    x2 = _as_tiles(x.reshape(-1))
    t2 = _as_tiles(t.reshape(-1))
    return _reduction_call(_sq_diff_sum_kernel, [x2, t2], n,
                           flops=3 * n, transcendentals=0)


def pallas_log_sum_total(likelihood_list):
    """sum over all likelihood tensors of sum(log(l)), fused into one pallas_call."""
    flats = [l.reshape(-1) for l in likelihood_list]
    flat = flats[0] if len(flats) == 1 else jnp.concatenate(flats)
    n = int(flat.shape[0])
    l2 = _as_tiles(flat)
    return _reduction_call(_log_sum_kernel, [l2], n,
                           flops=n, transcendentals=n)


def rate_distortion_loss(output, target, lmbda=0.01, loss_type="mse"):
    """JAX/Pallas equivalent of RateDistortionLoss.forward (type='mse').

    output: dict with
       'x_hat'      : (N, C, H, W) reconstruction
       'likelihoods': dict of name -> likelihood tensors (any shapes)
    target: (N, C, H, W)
    """
    N, C, H, W = target.shape
    num_pixels = N * H * W

    out = {}

    # bpp_loss = sum_l ( log(l).sum() ) / (-log(2) * num_pixels)
    total_log = pallas_log_sum_total(list(output["likelihoods"].values()))
    out["bpp_loss"] = total_log / (-math.log(2) * num_pixels)

    if loss_type == "mse":
        # nn.MSELoss() -> mean over all elements (N*C*H*W)
        total_elems = N * C * H * W
        mse_loss = pallas_sq_diff_sum(output["x_hat"], target) / total_elems
        out["mse_loss"] = mse_loss
        out["loss"] = lmbda * (255.0 ** 2) * mse_loss + out["bpp_loss"]
    else:
        # TODO(synk): MS-SSIM branch (compute_msssim) not implemented as a Pallas kernel.
        raise NotImplementedError("only type='mse' is implemented")

    return out


# ----------------------------- demo ------------------------------------------

if __name__ == "__main__":
    key = jax.random.PRNGKey(0)
    k1, k2, k3, k4 = jax.random.split(key, 4)

    # Small shapes consistent with the forward: image-like NCHW tensors.
    N, C, H, W = 2, 3, 16, 16
    target = jax.random.uniform(k1, (N, C, H, W), dtype=jnp.float32)
    x_hat = jnp.clip(
        target + 0.05 * jax.random.normal(k2, (N, C, H, W), dtype=jnp.float32),
        0.0, 1.0)

    # Likelihoods: two latent tensors (e.g. y and z), values in (0, 1].
    y_lik = jax.random.uniform(k3, (N, 8, H // 4, W // 4),
                               dtype=jnp.float32, minval=0.05, maxval=1.0)
    z_lik = jax.random.uniform(k4, (N, 4, H // 8, W // 8),
                               dtype=jnp.float32, minval=0.05, maxval=1.0)

    output = {"x_hat": x_hat, "likelihoods": {"y": y_lik, "z": z_lik}}

    result = rate_distortion_loss(output, target, lmbda=0.01, loss_type="mse")
    result = jax.tree_util.tree_map(jax.block_until_ready, result)

    # Pure-JAX reference check.
    num_pixels = N * H * W
    ref_bpp = (jnp.sum(jnp.log(y_lik)) + jnp.sum(jnp.log(z_lik))) / (
        -math.log(2) * num_pixels)
    ref_mse = jnp.mean((x_hat - target) ** 2)
    ref_loss = 0.01 * 255.0 ** 2 * ref_mse + ref_bpp

    assert jnp.allclose(result["bpp_loss"], ref_bpp, rtol=1e-5, atol=1e-6)
    assert jnp.allclose(result["mse_loss"], ref_mse, rtol=1e-5, atol=1e-6)
    assert jnp.allclose(result["loss"], ref_loss, rtol=1e-5, atol=1e-6)

    print("KERNEL_OK")
</pallas_src>

<mosaic_0001>
module attributes {stable_mosaic.version = 11 : i64} {
  func.func @_log_sum_kernel(%arg0: i32, %arg1: i32, %arg2: memref<8x128xf32, #tpu.memory_space<vmem>>, %arg3: memref<1x1x1xf32, #tpu.memory_space<vmem>>, %arg4: memref<8x128xf32, #tpu.memory_space<vmem>>) attributes {dimension_semantics = [#tpu.dimension_semantics<parallel>, #tpu.dimension_semantics<arbitrary>], iteration_bounds = array<i64: 2, 1>, scalar_prefetch = 0 : i64, scratch_operands = 1 : i64, tpu.core_type = #tpu.core_type<tc>, window_params = [{transform_indices = @transform_0, window_bounds = array<i64: 8, 128>}, {transform_indices = @transform_1, window_bounds = array<i64: 1, 1, 1>}]} {
    %c0_i32 = arith.constant 0 : i32
    %0 = arith.cmpi eq, %arg1, %c0_i32 : i32
    %1 = arith.extui %0 : i1 to i32
    %c0_i32_0 = arith.constant 0 : i32
    %2 = arith.cmpi ne, %1, %c0_i32_0 : i32
    scf.if %2 {
      %cst_8 = arith.constant 0.000000e+00 : f32
      %25 = vector.broadcast %cst_8 : f32 to vector<8x128xf32>
      %c0_9 = arith.constant 0 : index
      %c0_10 = arith.constant 0 : index
      %26 = vector.load %arg4[%c0_9, %c0_10] : memref<8x128xf32, #tpu.memory_space<vmem>>, vector<8x128xf32>
      tpu.vector_store %arg4[%c0_9, %c0_10], %25 {strides = array<i32>} : memref<8x128xf32, #tpu.memory_space<vmem>>, vector<8x128xf32>,
    } else {
    }
    %c1_i32 = arith.constant 1 : i32
    %3 = arith.muli %arg0, %c1_i32 : i32
    %4 = arith.addi %3, %arg1 : i32
    %c1024_i32 = arith.constant 1024 : i32
    %5 = arith.muli %4, %c1024_i32 : i32
    %6 = tpu.iota {dimensions = array<i32: 0>} : vector<8x128xi32>
    %7 = tpu.iota {dimensions = array<i32: 1>} : vector<8x128xi32>
    %c128_i32 = arith.constant 128 : i32
    %8 = vector.broadcast %c128_i32 : i32 to vector<8x128xi32>
    %9 = arith.muli %6, %8 : vector<8x128xi32>
    %10 = vector.broadcast %5 : i32 to vector<8x128xi32>
    %11 = arith.addi %10, %9 : vector<8x128xi32>
    %12 = arith.addi %11, %7 : vector<8x128xi32>
    %c288_i32 = arith.constant 288 : i32
    %13 = vector.broadcast %c288_i32 : i32 to vector<8x128xi32>
    %14 = arith.cmpi slt, %12, %13 : vector<8x128xi32>
    %c0 = arith.constant 0 : index
    %c0_1 = arith.constant 0 : index
    %15 = vector.load %arg2[%c0, %c0_1] : memref<8x128xf32, #tpu.memory_space<vmem>>, vector<8x128xf32>
    %cst = arith.constant 1.000000e+00 : f32
    %16 = vector.broadcast %cst : f32 to vector<8x128xf32>
    %17 = arith.select %14, %15, %16 : vector<8x128xi1>, vector<8x128xf32>
    %c0_2 = arith.constant 0 : index
    %c0_3 = arith.constant 0 : index
    %18 = vector.load %arg4[%c0_2, %c0_3] : memref<8x128xf32, #tpu.memory_space<vmem>>, vector<8x128xf32>
    %19 = math.log %17 : vector<8x128xf32>
    %20 = arith.addf %18, %19 : vector<8x128xf32>
    %c0_4 = arith.constant 0 : index
    %c0_5 = arith.constant 0 : index
    %21 = vector.load %arg4[%c0_4, %c0_5] : memref<8x128xf32, #tpu.memory_space<vmem>>, vector<8x128xf32>
    tpu.vector_store %arg4[%c0_4, %c0_5], %20 {strides = array<i32>} : memref<8x128xf32, #tpu.memory_space<vmem>>, vector<8x128xf32>,
    %c0_i32_6 = arith.constant 0 : i32
    %22 = arith.cmpi eq, %arg1, %c0_i32_6 : i32
    %23 = arith.extui %22 : i1 to i32
    %c0_i32_7 = arith.constant 0 : i32
    %24 = arith.cmpi ne, %23, %c0_i32_7 : i32
    scf.if %24 {
      %c0_8 = arith.constant 0 : index
      %c0_9 = arith.constant 0 : index
      %25 = vector.load %arg4[%c0_8, %c0_9] : memref<8x128xf32, #tpu.memory_space<vmem>>, vector<8x128xf32>
      %26 = vector.shape_cast %25 : vector<8x128xf32> to vector<1x8x128xf32>
      %cst_10 = arith.constant dense<0.000000e+00> : vector<1xf32>
      %27 = vector.multi_reduction <add>, %26, %cst_10 [1, 2] : vector<1x8x128xf32> to vector<1xf32>
      %28 = vector.shape_cast %27 : vector<1xf32> to vector<1x1x1xf32>
      %29 = vector.extract %28[0, 0, 0] : f32 from vector<1x1x1xf32>
      %30 = vector.broadcast %29 : f32 to vector<1x1x1xf32>
      %c0_11 = arith.constant 0 : index
      %c0_12 = arith.constant 0 : index
      %c0_13 = arith.constant 0 : index
      %31 = vector.load %arg3[%c0_11, %c0_12, %c0_13] : memref<1x1x1xf32, #tpu.memory_space<vmem>>, vector<1x1x1xf32>
      tpu.vector_store %arg3[%c0_11, %c0_12, %c0_13], %30 {strides = array<i32>} : memref<1x1x1xf32, #tpu.memory_space<vmem>>, vector<1x1x1xf32>,
    } else {
    }
    return
  }
  func.func @transform_0(%arg0: i32, %arg1: i32) -> (i32, i32) {
    %c1_i32 = arith.constant 1 : i32
    %0 = arith.muli %arg0, %c1_i32 : i32
    %1 = arith.addi %0, %arg1 : i32
    %c0_i32 = arith.constant 0 : i32
    %2 = arith.minsi %1, %c0_i32 : i32
    %c0_i32_0 = arith.constant 0 : i32
    %c0_i32_1 = arith.constant 0 : i32
    return %2, %c0_i32_0 : i32, i32
  }
  func.func @transform_1(%arg0: i32, %arg1: i32) -> (i32, i32, i32) {
    %c0_i32 = arith.constant 0 : i32
    %c0_i32_0 = arith.constant 0 : i32
    %c0_i32_1 = arith.constant 0 : i32
    return %arg0, %c0_i32, %c0_i32_0 : i32, i32, i32
  }
}

</mosaic_0001>

<llo_original>
// kernel: tpu_custom_call.1
$region0: #{tpu_custom_call.1}
  #allocation0 [shape = 'u32[]', space=smem, size = 0x4, offset = 0x4, fixed_abs, tag = 'smem constant byte address 0x4 - core index']
  #allocation1 [shape = 'u32[144,128]{1,0:T(1,128)}', space=vmem, size = 0x12000, scoped, tag = 'internal scratch']
  #allocation2 [shape = 'f32[8,128]{1,0:T(8,128)}', space=vmem, size = 0x1000, scoped, tag = 'scratch operand']
  %s0 = inlined_call_operand.hbm [shape: f32[8,128], index: 0, kind: input, shape index: {}]
  %s1 = inlined_call_operand.vmem [shape: f32[2,1,1], index: 1, kind: output, shape index: {}]
  %s2 = sld [smem:[#allocation0]]
  $region49: #{tpu_custom_call.1} parent=0
    _
  %s4 = ssub.s32 1, %s2
  %s5 = scalar_select 0, %s4, %s2
  $region1: #{tpu_custom_call.1} parent=0
    #allocation3 [shape = 'u8[8192]{0}', space=vmem, size = 0x2000, scoped, tag = 'input window, operand 0']
    #allocation4 [shape = 's32[2]{0}', space=sflag, size = 0x8, scoped, tag = 'scoped memory for tpu_custom_call.1']
    %6 = vsyncpa [#allocation4], 0
    %s7 = scalar_lea.sflag [#allocation4], 1
    %8 = vsyncpa %s7, 0
    loop: start=0, step=1, limit=4
    $region2: #{tpu_custom_call.1} parent=1 // loop_pre_header
      _
    $region3: #{tpu_custom_call.1} parent=1 // loop_header
      %s10 = sphi 0, %s14
      %p11 = scmp.ge.s32.totalorder %s10, 4
      %s17 = sphi 0, %s29
      %s18 = sphi 0, %s25
      %s19 = sphi 0, %s17
      %s20 = sphi 0, %s18
      %s21 = sphi 0, %s19
      %s22 = sphi 0, %s20
      %s38 = sphi 0, %s40
      %s41 = sphi 0, %s38
      %s42 = sphi 0, %s41
      %s58 = sphi 0, %s42
      %s64 = sphi 0, %s66
      %s67 = sphi 0, %s64
      %s68 = sphi 0, %s67
      %s84 = sphi 0, %s68
    $region4: #{tpu_custom_call.1} parent=1 // loop_header_branch
      %13 = sbr.rel (%p11) target = $region8
    $region5: #{tpu_custom_call.1} parent=1 // loop_body
      %s15 = ssub.s32 %s10, 1
      %s16 = ssub.s32 %s10, 2
      %s23 = sadd.s32 1, %s18
      %p24 = scmp.ge.s32.totalorder %s23, 1
      %s25 = scalar_select %p24, 0, %s23
      %s26 = sadd.s32 1, %s17
      %s27 = scalar_select %p24, %s26, %s17
      %p28 = scmp.ge.s32.totalorder %s27, 2
      %s29 = scalar_select %p28, 0, %s27
      %s30 = sadd.s32 %s17, %s18
      %p31 = scmp.lt.s32.totalorder %s30, 0
      %s32 = scalar_select %p31, %s30, 0
      %s33 = sadd.s32 %s29, %s25
      %p34 = scmp.lt.s32.totalorder %s33, 0
      %s35 = scalar_select %p34, %s33, 0
      %s36 = ssub.s32 %s32, %s35
      %p37 = scmp.eq.s32.totalorder %s36, 0
      %s39 = sadd.s32 %s38, 1
      %s40 = scalar_select %p37, %s38, %s39
      %p43 = pneg %p37
      %p44 = scmp.eq.s32.totalorder %s10, 1
      %p45 = por %p43, %p44
      %p46 = scmp.ne.s32.totalorder %s38, %s41
      %p47 = scmp.eq.s32.totalorder %s10, 0
      %p48 = por %p46, %p47
      %p49 = scmp.ne.s32.totalorder %s38, %s41
      %p50 = scmp.eq.s32.totalorder %s15, 1
      %p51 = por %p49, %p50
      %p52 = scmp.ne.s32.totalorder %s41, %s42
      %p53 = scmp.eq.s32.totalorder %s15, 0
      %p54 = por %p52, %p53
      %p55 = scmp.ne.s32.totalorder %s41, %s42
      %p56 = scmp.eq.s32.totalorder %s16, 1
      %p57 = por %p55, %p56
      %p59 = scmp.ne.s32.totalorder %s42, %s58
      %p60 = scmp.eq.s32.totalorder %s16, 0
      %p61 = por %p59, %p60
      %s62 = ssub.s32 %s17, %s29
      %p63 = scmp.eq.s32.totalorder %s62, 0
      %s65 = sadd.s32 %s64, 1
      %s66 = scalar_select %p63, %s64, %s65
      %p69 = pneg %p63
      %p70 = scmp.eq.s32.totalorder %s10, 1
      %p71 = por %p69, %p70
      %p72 = scmp.ne.s32.totalorder %s64, %s67
      %p73 = scmp.eq.s32.totalorder %s10, 0
      %p74 = por %p72, %p73
      %p75 = scmp.ne.s32.totalorder %s64, %s67
      %p76 = scmp.eq.s32.totalorder %s15, 1
      %p77 = por %p75, %p76
      %p78 = scmp.ne.s32.totalorder %s67, %s68
      %p79 = scmp.eq.s32.totalorder %s15, 0
      %p80 = por %p78, %p79
      %p81 = scmp.ne.s32.totalorder %s67, %s68
      %p82 = scmp.eq.s32.totalorder %s16, 1
      %p83 = por %p81, %p82
      %p85 = scmp.ne.s32.totalorder %s68, %s84
      %p86 = scmp.eq.s32.totalorder %s16, 0
      %p87 = por %p85, %p86
      %p88 = scmp.le.s32.totalorder 1, %s10
      %p89 = scmp.lt.s32.totalorder %s10, 3
      %p90 = pnand %p88, %p89
      %p91 = pneg %p90
      // Predicated region
      $region9: #{tpu_custom_call.1} parent=5 // pred_check
        _
      $region10: #{tpu_custom_call.1} parent=5 // pred_check_branch
        %93 = sbr.rel (%p90) target = $region12
      $region11: #{tpu_custom_call.1} parent=5 // pred_region
        %s94 = ssub.s32 %s10, 1
      $region12: #{tpu_custom_call.1} parent=5 // pred_fallthru
        _
      %p95 = scmp.lt.s32.totalorder %s10, 2
      // Predicated region
      $region13: #{tpu_custom_call.1} parent=5 // pred_check
        %p96 = pneg %p95
      $region14: #{tpu_custom_call.1} parent=5 // pred_check_branch
        %98 = sbr.rel (%p96) target = $region16
      $region15: #{tpu_custom_call.1} parent=5 // pred_region
        // Predicated region
        $region17: #{tpu_custom_call.1} parent=15 // pred_check
          %p99 = pneg %p48
        $region18: #{tpu_custom_call.1} parent=15 // pred_check_branch
          %101 = sbr.rel (%p99) target = $region20
        $region19: #{tpu_custom_call.1} parent=15 // pred_region
          %s102 = sand.u32 %s38, 1
          %s103 = scalar_lea.sflag [#allocation4], %s102
          %s104 = sand.u32 %s38, 1
          %s105 = smul.addr %s104, 8
          %s106 = scalar_lea.vmem [#allocation3], %s105
          %s107 = sadd.s32 %s17, %s18
          %p108 = scmp.lt.s32.totalorder %s107, 0
          %s109 = scalar_select %p108, %s107, 0
          %s111 = ssub.s32 128, 128
          %112 = vsyncadd %s103, %s111
          %s113 = smul.addr %s109, 128
          %s114 = scalar_lea.hbm %s0, %s113
          %s116 = sshll.u32 %s106, 4
          %s117 = int_to_ptr.vmem [resolvable:$true] %s116
          %119 = dma.hbm_to_vmem [thread:$0]  %s114, 128, %s117, %s103
        $region20: #{tpu_custom_call.1} parent=15 // pred_fallthru
          _
      $region16: #{tpu_custom_call.1} parent=5 // pred_fallthru
        _
      %p120 = scmp.le.s32.totalorder 1, %s10
      %p121 = scmp.lt.s32.totalorder %s10, 3
      %p122 = pnand %p120, %p121
      %p123 = pneg %p122
      // Predicated region
      $region21: #{tpu_custom_call.1} parent=5 // pred_check
        _
      $region22: #{tpu_custom_call.1} parent=5 // pred_check_branch
        %125 = sbr.rel (%p122) target = $region24
      $region23: #{tpu_custom_call.1} parent=5 // pred_region
        %s126 = ssub.s32 %s10, 1
        %s127 = sand.u32 %s41, 1
        %s128 = scalar_lea.sflag [#allocation4], %s127
        %s129 = sand.u32 %s41, 1
        %s130 = smul.addr %s129, 8
        %s131 = scalar_lea.vmem [#allocation3], %s130
        // Predicated region
        $region25: #{tpu_custom_call.1} parent=23 // pred_check
          %p132 = pneg %p54
        $region26: #{tpu_custom_call.1} parent=23 // pred_check_branch
          %134 = sbr.rel (%p132) target = $region28
        $region27: #{tpu_custom_call.1} parent=23 // pred_region
          %135 = dma.done %s128, 128
        $region28: #{tpu_custom_call.1} parent=23 // pred_fallthru
          _
        %s136 = sand.u32 %s41, 1
        %s137 = scalar_lea.sflag [#allocation4], %s136
        %s138 = sand.u32 %s41, 1
        %s139 = smul.addr %s138, 8
        %s140 = scalar_lea.vmem [#allocation3], %s139
        %p141 = pneg %p54
        %p142 = pneg %p51
        %p143 = pneg %p80
        %p144 = pneg %p77
        %p145 = scmp.lt.s32.totalorder %s19, 1
        %s146 = scalar_select %p145, %s19, 1
        %s147 = scalar_lea.vmem %s1, %s146
        %s148 = sadd.s32 %s19, %s20
        %p149 = scmp.lt.s32.totalorder %s148, 0
        %s150 = scalar_select %p149, %s148, 0
        %p151 = scmp.lt.s32.totalorder %s19, 1
        %s152 = scalar_select %p151, %s19, 1
        %s153 = scalar_lea.vmem %s1, %s152
        %p154 = scmp.eq.s32.totalorder %s20, 0
        // Predicated region
        $region29: #{tpu_custom_call.1} parent=23 // pred_check
          %p155 = pneg %p154
        $region30: #{tpu_custom_call.1} parent=23 // pred_check_branch
          %157 = sbr.rel (%p155) target = $region32
        $region31: #{tpu_custom_call.1} parent=23 // pred_region
          %158 = vst [vmem:[#allocation2] sm:$0xff] 0.0
        $region32: #{tpu_custom_call.1} parent=23 // pred_fallthru
          _
        %s159 = sadd.s32 %s19, %s20
        %s160 = smul.u32 %s159, 1024
        %v161 = vlaneseq
        %v162 = vshrl.u32 %v161, 7
        %v163 = vlaneseq
        %v164 = vand.u32 %v163, 127
        %v165 = vmul.u32 %v162, 128
        %v166 = vstv %s160
        %v167 = vadd.s32 %v166, %v165
        %v168 = vadd.s32 %v167, %v164
        %vm169 = vcmp.lt.s32.totalorder %v168, 288
        %v170 = vld [vmem:[%s131] sm:$0xff]
        %v171 = vsel %vm169, %v170, 1.0
        %v172 = vld [vmem:[#allocation2] sm:$0xff]
        %v173 = vlog2.pop %v171
        %v174 = vmul.f32 %v173, 0.6931472
        %v175 = vadd.f32 %v172, %v174
        %176 = vst [vmem:[#allocation2] sm:$0xff] %v175
        // Predicated region
        $region33: #{tpu_custom_call.1} parent=23 // pred_check
          %p177 = pneg %p154
        $region34: #{tpu_custom_call.1} parent=23 // pred_check_branch
          %179 = sbr.rel (%p177) target = $region36
        $region35: #{tpu_custom_call.1} parent=23 // pred_region
          %v180 = vld [vmem:[#allocation2] sm:$0xff]
          %181 = vadd.xlane.f32.xlu0 %v180
          %v182 = vpop.xlane.xlu0 %181
          %v183 = vrot.slane %v182, 4
          %v184 = vadd.f32 %v182, %v183
          %v185 = vrot.slane %v184, 2
          %v186 = vadd.f32 %v184, %v185
          %v187 = vrot.slane %v186, 1
          %v188 = vadd.f32 %v186, %v187
          %s189 = vtos %v188
          %v190 = vstv %s189
          %vm191 = vcmask 0
          %192 = vst.msk [vmem:[%s153] sm:$0x1] %vm191, %v190
        $region36: #{tpu_custom_call.1} parent=23 // pred_fallthru
          _
        %p193 = scmp.lt.s32.totalorder %s19, 1
        %s194 = scalar_select %p193, %s19, 1
        %s195 = scalar_lea.vmem %s1, %s194
        // Predicated region
        $region37: #{tpu_custom_call.1} parent=23 // pred_check
          %p196 = pneg %p77
        $region38: #{tpu_custom_call.1} parent=23 // pred_check_branch
          %198 = sbr.rel (%p196) target = $region40
        $region39: #{tpu_custom_call.1} parent=23 // pred_region
          _
        $region40: #{tpu_custom_call.1} parent=23 // pred_fallthru
          _
      $region24: #{tpu_custom_call.1} parent=5 // pred_fallthru
        _
      %p199 = scmp.le.s32.totalorder 2, %s10
      // Predicated region
      $region41: #{tpu_custom_call.1} parent=5 // pred_check
        %p200 = pneg %p199
      $region42: #{tpu_custom_call.1} parent=5 // pred_check_branch
        %202 = sbr.rel (%p200) target = $region44
      $region43: #{tpu_custom_call.1} parent=5 // pred_region
        %s203 = ssub.s32 %s10, 2
        // Predicated region
        $region45: #{tpu_custom_call.1} parent=43 // pred_check
          %p204 = pneg %p83
        $region46: #{tpu_custom_call.1} parent=43 // pred_check_branch
          %206 = sbr.rel (%p204) target = $region48
        $region47: #{tpu_custom_call.1} parent=43 // pred_region
          %p207 = scmp.lt.s32.totalorder %s21, 1
          %s208 = scalar_select %p207, %s21, 1
          %s209 = scalar_lea.vmem %s1, %s208
        $region48: #{tpu_custom_call.1} parent=43 // pred_fallthru
          _
      $region44: #{tpu_custom_call.1} parent=5 // pred_fallthru
        _
    $region6: #{tpu_custom_call.1} parent=1 // loop_footer
      %s14 = sadd.s32 1, %s10
    $region7: #{tpu_custom_call.1} parent=1 // loop_footer_branch
      %9 = sbr.rel target = $region3
    $region8: #{tpu_custom_call.1} parent=1 // loop_exit
      _
    %210 = vsyncpa [#allocation4], 1
    %s211 = scalar_lea.sflag [#allocation4], 1
    %212 = vsyncpa %s211, 1

</llo_original>
